<compile_context>
chip_gen: v5e
topology: v5e:2x2
jax: 0.10.0
libtpu: 0.0.40
codegen_flags: <defaults>
</compile_context>

<pallas_src>
import functools

import jax
import jax.numpy as jnp
from jax.experimental import pallas as pl
from jax.experimental.pallas import tpu as pltpu

NEG_SLOPE = 0.01            # nn.LeakyReLU default negative slope
BN_EPS = 1e-5               # nn.BatchNorm1d default eps
MXU_DTYPE = jnp.bfloat16    # MXU operand dtype (f32 accumulation)


def _lrelu(x):
    return jnp.where(x >= 0.0, x, NEG_SLOPE * x)


def _mdot(a, b):
    """MXU matmul: bf16 operands, f32 accumulation."""
    return jnp.dot(a.astype(MXU_DTYPE), b.astype(MXU_DTYPE),
                   preferred_element_type=jnp.float32)


# ----------------------------------------------------------------------------
# Fused forward kernel (one grid step == one independent graph-batch forward)
# ----------------------------------------------------------------------------
def _gadgnn_kernel(feat_ref, L_ref, assign_ref, pool_ref, xlx_ref,
                   wslab_ref, rowbuf_ref, o_ref,
                   *, K, H, normalize, woff, roff):
    # static carve-outs from the two packed parameter buffers
    def W(name):
        r0, din, dout = woff[name]
        return wslab_ref[r0:r0 + din, 0:dout]

    def B(name):
        o, d = roff[name]
        return rowbuf_ref[:, o:o + d]

    G = pool_ref.shape[0]

    # ---- node MLP: linear -> act -> linear2 -> act -------------------------
    h = _lrelu(_mdot(feat_ref[...], W("w1")) + B("b1"))
    h = _lrelu(_mdot(h, W("w2")) + B("b2"))                       # [N, F]

    # ---- width x ChebConv with a SHARED Chebyshev basis ---------------------
    # Per-branch weights are pre-stacked along the output axis, so one
    # accumulation produces the concatenated output.  Loop-invariant bf16
    # casts (L_hat) hoisted; recurrence state kept in f32.
    L_b = L_ref[...].astype(MXU_DTYPE)
    h_b = h.astype(MXU_DTYPE)
    cheb = jnp.dot(h_b, W("cheb0").astype(MXU_DTYPE),
                   preferred_element_type=jnp.float32)
    if K > 1:
        z_prev = h                                                # T_0 (f32)
        z = jnp.dot(L_b, h_b, preferred_element_type=jnp.float32)  # T_1
        cheb = cheb + jnp.dot(z.astype(MXU_DTYPE),
                              W("cheb1").astype(MXU_DTYPE),
                              preferred_element_type=jnp.float32)
        for k in range(2, K):
            z_new = 2.0 * jnp.dot(L_b, z.astype(MXU_DTYPE),
                                  preferred_element_type=jnp.float32) - z_prev
            cheb = cheb + jnp.dot(z_new.astype(MXU_DTYPE),
                                  W(f"cheb{k}").astype(MXU_DTYPE),
                                  preferred_element_type=jnp.float32)
            z_prev, z = z, z_new
    cheb = cheb + B("cheb_b")                                     # [N, width*F]

    h = _lrelu(_mdot(cheb, W("w3")) + B("b3"))
    h = _lrelu(_mdot(h, W("w4")) + B("b4"))                       # [N, H]

    # ---- graph-level branches: shared-LHS fused matmul (linear8 | linear5) --
    xlx = xlx_ref[...]
    g0 = _mdot(xlx, W("w85")) + B("b85")                          # [G, 2H]
    ts = _lrelu(g0[:, :H])                                        # linear8 + act
    ts = _lrelu(_mdot(ts, W("w9")) + B("b9"))                     # [G, H]
    xLx = _lrelu(_mdot(g0[:, H:], W("w6")) + B("b6"))             # [G, H]

    # ---- per-node attention scores ------------------------------------------
    # gather ts to nodes: VPU broadcast/accumulate for small G (no MXU trip)
    assign = assign_ref[...]                                      # [N, G] one-hot
    if G <= 8:
        ts_node = assign[:, 0:1] * ts[0:1, :]
        for g in range(1, G):
            ts_node = ts_node + assign[:, g:g + 1] * ts[g:g + 1, :]
    else:
        ts_node = _mdot(assign, ts)                               # [N, H]
    scores = jnp.sum(h * ts_node, axis=-1, keepdims=True)         # [N, 1]
    # pool @ diag(scores) @ h == pool @ (scores * h)
    pooled = _mdot(pool_ref[...], scores * h)                     # [G, H]

    # ---- concat + BatchNorm1d (training-mode batch stats) + linear7 ---------
    hc = jnp.concatenate([pooled, xLx], axis=-1)                  # [G, 2H]
    if normalize:
        m = jnp.mean(hc, axis=0, keepdims=True)
        v = jnp.mean((hc - m) ** 2, axis=0, keepdims=True)
        hc = (hc - m) * jax.lax.rsqrt(v + BN_EPS) * B("gamma") + B("beta")
    # TODO(synk): nn.Dropout treated as identity.
    y = _mdot(hc, W("w7")) + B("b7")
    o_ref[...] = y.astype(o_ref.dtype)


# ----------------------------------------------------------------------------
# Parameter packing: two contiguous buffers
# ----------------------------------------------------------------------------
def _pack_weight_slab(weights):
    """Stack 2-D weights row-wise; rows padded to x8, cols padded to 128."""
    cols = max(int(w.shape[1]) for w in weights.values())
    cols = max(128, ((cols + 127) // 128) * 128)
    blocks, woff, r = [], {}, 0
    for name, w in weights.items():
        din, dout = int(w.shape[0]), int(w.shape[1])
        rpad = (-din) % 8
        blocks.append(jnp.pad(w.astype(jnp.float32),
                              ((0, rpad), (0, cols - dout))))
        woff[name] = (r, din, dout)
        r += din + rpad
    return jnp.concatenate(blocks, axis=0), woff


def _pack_row_buf(rows):
    """Concat 1-D bias/BN vectors along lanes, each segment padded to x128."""
    segs, roff, o = [], {}, 0
    for name, v in rows.items():
        d = int(v.shape[0])
        pad = (-d) % 128
        segs.append(jnp.pad(v.astype(jnp.float32), (0, pad)))
        roff[name] = (o, d)
        o += d + pad
    return jnp.concatenate(segs).reshape(1, -1), roff


def pack_params(params):
    K = int(params["cheb_w"].shape[0])
    H = int(params["w4"].shape[1])
    nclass = int(params["b7"].shape[0])

    weights = {"w1": params["w1"], "w2": params["w2"]}
    for k in range(K):
        weights[f"cheb{k}"] = params["cheb_w"][k]
    weights["w3"] = params["w3"]
    weights["w4"] = params["w4"]
    # shared-LHS fusion: linear8 | linear5 stacked along the output axis
    weights["w85"] = jnp.concatenate([params["w8"], params["w5"]], axis=1)
    weights["w9"] = params["w9"]
    weights["w6"] = params["w6"]
    weights["w7"] = params["w7"]
    wslab, woff = _pack_weight_slab(weights)

    rows = {
        "b1": params["b1"], "b2": params["b2"], "cheb_b": params["cheb_b"],
        "b3": params["b3"], "b4": params["b4"],
        "b85": jnp.concatenate([params["b8"], params["b5"]]),
        "b9": params["b9"], "b6": params["b6"],
        "gamma": params["bn_gamma"], "beta": params["bn_beta"],
        "b7": params["b7"],
    }
    rowbuf, roff = _pack_row_buf(rows)

    return dict(wslab=wslab, rowbuf=rowbuf, woff=woff, roff=roff,
                K=K, H=H, nclass=nclass)


# ----------------------------------------------------------------------------
# Wrapper: single pallas_call, optional leading graph-batch grid axis
# ----------------------------------------------------------------------------
def gadgnn_forward(packed, features, xlx_batch, L_hat, assign, pool,
                   normalize=True):
    batched = features.ndim == 3
    if not batched:
        features, L_hat, assign, pool, xlx_batch = (
            a[None] for a in (features, L_hat, assign, pool, xlx_batch))
    B, N, F = features.shape
    G = xlx_batch.shape[1]
    nclass = packed["nclass"]
    wslab, rowbuf = packed["wslab"], packed["rowbuf"]

    kern = functools.partial(
        _gadgnn_kernel, K=packed["K"], H=packed["H"], normalize=normalize,
        woff=packed["woff"], roff=packed["roff"])

    out = pl.pallas_call(
        kern,
        out_shape=jax.ShapeDtypeStruct((B, G, nclass), jnp.float32),
        grid=(B,),
        in_specs=[
            pl.BlockSpec((None, N, F), lambda b: (b, 0, 0)),      # features
            pl.BlockSpec((None, N, N), lambda b: (b, 0, 0)),      # L_hat
            pl.BlockSpec((None, N, G), lambda b: (b, 0, 0)),      # assign
            pl.BlockSpec((None, G, N), lambda b: (b, 0, 0)),      # pool
            pl.BlockSpec((None, G, F), lambda b: (b, 0, 0)),      # xLx_batch
            pl.BlockSpec(wslab.shape, lambda b: (0, 0)),          # weight slab (resident)
            pl.BlockSpec(rowbuf.shape, lambda b: (0, 0)),         # bias/BN row (resident)
        ],
        out_specs=pl.BlockSpec((None, G, nclass), lambda b: (b, 0, 0)),
        compiler_params=pltpu.CompilerParams(
            dimension_semantics=("parallel",)),
    )(features, L_hat, assign, pool, xlx_batch, wslab, rowbuf)
    return out if batched else out[0]


# ----------------------------------------------------------------------------
# Parameter init (deterministic, synthetic)
# ----------------------------------------------------------------------------
def init_params(key, featuredim, hdim, nclass, width, depth):
    def lin(k, din, dout):
        kw, kb = jax.random.split(k)
        w = jax.random.normal(kw, (din, dout), jnp.float32) * 0.1
        b = jax.random.normal(kb, (dout,), jnp.float32) * 0.1
        return w, b

    keys = jax.random.split(key, 12)
    p = {}
    p["w1"], p["b1"] = lin(keys[0], featuredim, featuredim)        # linear
    p["w2"], p["b2"] = lin(keys[1], featuredim, featuredim)        # linear2
    p["w3"], p["b3"] = lin(keys[2], featuredim * width, hdim)      # linear3
    p["w4"], p["b4"] = lin(keys[3], hdim, hdim)                    # linear4
    p["w5"], p["b5"] = lin(keys[4], featuredim, hdim)              # linear5
    p["w6"], p["b6"] = lin(keys[5], hdim, hdim)                    # linear6
    p["w7"], p["b7"] = lin(keys[6], hdim * 2, nclass)              # linear7
    p["w8"], p["b8"] = lin(keys[7], featuredim, hdim)              # linear8
    p["w9"], p["b9"] = lin(keys[8], hdim, hdim)                    # linear9
    # ChebConv weights of the `width` branches stacked along the OUTPUT axis:
    # cheb_w[k] = [W_b0[k] | W_b1[k] | ...]  ->  [depth, F, width*F]
    ck = jax.random.split(keys[9], width)
    ws, bs = [], []
    for i in range(width):
        kw, kb = jax.random.split(ck[i])
        ws.append(jax.random.normal(kw, (depth, featuredim, featuredim),
                                    jnp.float32) * 0.1)
        bs.append(jax.random.normal(kb, (featuredim,), jnp.float32) * 0.1)
    p["cheb_w"] = jnp.concatenate(ws, axis=-1)
    p["cheb_b"] = jnp.concatenate(bs, axis=-1)
    p["bn_gamma"] = jnp.ones((hdim * 2,), jnp.float32)
    p["bn_beta"] = jnp.zeros((hdim * 2,), jnp.float32)
    return p


# ----------------------------------------------------------------------------
# Main
# ----------------------------------------------------------------------------
if __name__ == "__main__":
    featuredim, hdim, nclass = 8, 32, 4
    width, depth = 2, 3
    normalize = True

    n_per_graph, num_graphs = 8, 2
    N = n_per_graph * num_graphs

    key = jax.random.PRNGKey(0)
    k_feat, k_xlx, k_params = jax.random.split(key, 3)

    features = jax.random.normal(k_feat, (N, featuredim), jnp.float32)
    xlx_batch = jax.random.normal(k_xlx, (num_graphs, featuredim), jnp.float32)

    # Build a small graph batch: each graph is an 8-node ring.
    A = jnp.zeros((N, N), jnp.float32)
    for g in range(num_graphs):
        off = g * n_per_graph
        for i in range(n_per_graph):
            a, b = off + i, off + (i + 1) % n_per_graph
            A = A.at[a, b].set(1.0).at[b, a].set(1.0)
    deg = jnp.sum(A, axis=1)
    d_inv_sqrt = jnp.where(deg > 0, 1.0 / jnp.sqrt(deg), 0.0)
    # PyG ChebConv (sym norm, lambda_max=2): L_hat = -D^{-1/2} A D^{-1/2}
    L_hat = -(d_inv_sqrt[:, None] * A * d_inv_sqrt[None, :])

    # node -> graph one-hot membership [N, G] and mean-pooling matrix [G, N]
    graph_id = jnp.repeat(jnp.arange(num_graphs, dtype=jnp.int32), n_per_graph)
    assign = (graph_id[:, None] == jnp.arange(num_graphs)[None, :]).astype(
        jnp.float32)
    pool = assign.T / float(n_per_graph)

    params = init_params(k_params, featuredim, hdim, nclass, width, depth)
    packed = pack_params(params)

    # single (unbatched) forward — matches one PyTorch forward() call
    out = gadgnn_forward(packed, features, xlx_batch, L_hat, assign, pool,
                         normalize=normalize)
    out = jax.block_until_ready(out)
    assert out.shape == (num_graphs, nclass)
    assert bool(jnp.all(jnp.isfinite(out)))

    # batched mode: grid over independent graph-batches ("parallel" axis)
    Bn = 2
    feats_b = jnp.stack([features, features * 0.5])
    xlx_b = jnp.stack([xlx_batch, xlx_batch * 0.5])
    L_b = jnp.stack([L_hat, L_hat])
    assign_b = jnp.stack([assign, assign])
    pool_b = jnp.stack([pool, pool])
    out_b = gadgnn_forward(packed, feats_b, xlx_b, L_b, assign_b, pool_b,
                           normalize=normalize)
    out_b = jax.block_until_ready(out_b)
    assert out_b.shape == (Bn, num_graphs, nclass)
    assert bool(jnp.all(jnp.isfinite(out_b)))
    assert bool(jnp.allclose(out_b[0], out, rtol=1e-3, atol=1e-3))

    print("KERNEL_OK")
</pallas_src>

<mosaic_0001>
module attributes {stable_mosaic.version = 11 : i64} {
  func.func @_gadgnn_kernel(%arg0: i32, %arg1: memref<1x16x8xf32, #tpu.memory_space<vmem>>, %arg2: memref<1x16x16xf32, #tpu.memory_space<vmem>>, %arg3: memref<1x16x2xf32, #tpu.memory_space<vmem>>, %arg4: memref<1x2x16xf32, #tpu.memory_space<vmem>>, %arg5: memref<1x2x8xf32, #tpu.memory_space<vmem>>, %arg6: memref<224x128xf32, #tpu.memory_space<vmem>>, %arg7: memref<1x1408xf32, #tpu.memory_space<vmem>>, %arg8: memref<1x2x4xf32, #tpu.memory_space<vmem>>) attributes {dimension_semantics = [#tpu.dimension_semantics<parallel>], iteration_bounds = array<i64: 1>, scalar_prefetch = 0 : i64, scratch_operands = 0 : i64, tpu.core_type = #tpu.core_type<tc>, window_params = [{transform_indices = @transform_0, window_bounds = array<i64: 1, 16, 8>}, {transform_indices = @transform_1, window_bounds = array<i64: 1, 16, 16>}, {transform_indices = @transform_2, window_bounds = array<i64: 1, 16, 2>}, {transform_indices = @transform_3, window_bounds = array<i64: 1, 2, 16>}, {transform_indices = @transform_4, window_bounds = array<i64: 1, 2, 8>}, {pipeline_mode = #tpu.pipeline_mode<synchronous>, transform_indices = @transform_5, window_bounds = array<i64: 224, 128>}, {pipeline_mode = #tpu.pipeline_mode<synchronous>, transform_indices = @transform_6, window_bounds = array<i64: 1, 1408>}, {transform_indices = @transform_7, window_bounds = array<i64: 1, 2, 4>}]} {
    %c0 = arith.constant 0 : index
    %c0_0 = arith.constant 0 : index
    %c0_1 = arith.constant 0 : index
    %0 = vector.load %arg1[%c0, %c0_0, %c0_1] : memref<1x16x8xf32, #tpu.memory_space<vmem>>, vector<1x16x8xf32>
    %1 = vector.shape_cast %0 : vector<1x16x8xf32> to vector<16x8xf32>
    %c0_2 = arith.constant 0 : index
    %c0_3 = arith.constant 0 : index
    %2 = vector.load %arg6[%c0_2, %c0_3] : memref<224x128xf32, #tpu.memory_space<vmem>>, vector<8x8xf32>
    %3 = arith.truncf %1 : vector<16x8xf32> to vector<16x8xbf16>
    %4 = arith.truncf %2 : vector<8x8xf32> to vector<8x8xbf16>
    %cst = arith.constant dense<0.000000e+00> : vector<16x8xf32>
    %5 = tpu.matmul %3, %4, %cst {dimension_numbers = #tpu.dot_dimension_numbers<[1], [0], [0], [1], [0, 0, 1, 1], [], []>} : vector<16x8xbf16>, vector<8x8xbf16>, vector<16x8xf32> -> vector<16x8xf32>
    %c0_4 = arith.constant 0 : index
    %c0_5 = arith.constant 0 : index
    %6 = vector.load %arg7[%c0_4, %c0_5] : memref<1x1408xf32, #tpu.memory_space<vmem>>, vector<1x8xf32>
    %7 = vector.broadcast %6 : vector<1x8xf32> to vector<16x8xf32>
    %8 = arith.addf %5, %7 : vector<16x8xf32>
    %cst_6 = arith.constant 0.000000e+00 : f32
    %9 = vector.broadcast %cst_6 : f32 to vector<16x8xf32>
    %10 = arith.cmpf oge, %8, %9 : vector<16x8xf32>
    %cst_7 = arith.constant 0.00999999977 : f32
    %11 = vector.broadcast %cst_7 : f32 to vector<16x8xf32>
    %12 = arith.mulf %11, %8 : vector<16x8xf32>
    %13 = arith.select %10, %8, %12 : vector<16x8xi1>, vector<16x8xf32>
    %c8 = arith.constant 8 : index
    %c0_8 = arith.constant 0 : index
    %14 = vector.load %arg6[%c8, %c0_8] : memref<224x128xf32, #tpu.memory_space<vmem>>, vector<8x8xf32>
    %15 = arith.truncf %13 : vector<16x8xf32> to vector<16x8xbf16>
    %16 = arith.truncf %14 : vector<8x8xf32> to vector<8x8xbf16>
    %cst_9 = arith.constant dense<0.000000e+00> : vector<16x8xf32>
    %17 = tpu.matmul %15, %16, %cst_9 {dimension_numbers = #tpu.dot_dimension_numbers<[1], [0], [0], [1], [0, 0, 1, 1], [], []>} : vector<16x8xbf16>, vector<8x8xbf16>, vector<16x8xf32> -> vector<16x8xf32>
    %c0_10 = arith.constant 0 : index
    %c128 = arith.constant 128 : index
    %18 = vector.load %arg7[%c0_10, %c128] : memref<1x1408xf32, #tpu.memory_space<vmem>>, vector<1x8xf32>
    %19 = vector.broadcast %18 : vector<1x8xf32> to vector<16x8xf32>
    %20 = arith.addf %17, %19 : vector<16x8xf32>
    %cst_11 = arith.constant 0.000000e+00 : f32
    %21 = vector.broadcast %cst_11 : f32 to vector<16x8xf32>
    %22 = arith.cmpf oge, %20, %21 : vector<16x8xf32>
    %cst_12 = arith.constant 0.00999999977 : f32
    %23 = vector.broadcast %cst_12 : f32 to vector<16x8xf32>
    %24 = arith.mulf %23, %20 : vector<16x8xf32>
    %25 = arith.select %22, %20, %24 : vector<16x8xi1>, vector<16x8xf32>
    %c0_13 = arith.constant 0 : index
    %c0_14 = arith.constant 0 : index
    %c0_15 = arith.constant 0 : index
    %26 = vector.load %arg2[%c0_13, %c0_14, %c0_15] : memref<1x16x16xf32, #tpu.memory_space<vmem>>, vector<1x16x16xf32>
    %27 = vector.shape_cast %26 : vector<1x16x16xf32> to vector<16x16xf32>
    %28 = arith.truncf %27 : vector<16x16xf32> to vector<16x16xbf16>
    %29 = arith.truncf %25 : vector<16x8xf32> to vector<16x8xbf16>
    %c16 = arith.constant 16 : index
    %c0_16 = arith.constant 0 : index
    %30 = vector.load %arg6[%c16, %c0_16] : memref<224x128xf32, #tpu.memory_space<vmem>>, vector<8x16xf32>
    %31 = arith.truncf %30 : vector<8x16xf32> to vector<8x16xbf16>
    %cst_17 = arith.constant dense<0.000000e+00> : vector<16x16xf32>
    %32 = tpu.matmul %29, %31, %cst_17 {dimension_numbers = #tpu.dot_dimension_numbers<[1], [0], [0], [1], [0, 0, 1, 1], [], []>} : vector<16x8xbf16>, vector<8x16xbf16>, vector<16x16xf32> -> vector<16x16xf32>
    %cst_18 = arith.constant dense<0.000000e+00> : vector<16x8xf32>
    %33 = tpu.matmul %28, %29, %cst_18 {dimension_numbers = #tpu.dot_dimension_numbers<[1], [0], [0], [1], [0, 0, 1, 1], [], []>} : vector<16x16xbf16>, vector<16x8xbf16>, vector<16x8xf32> -> vector<16x8xf32>
    %34 = arith.truncf %33 : vector<16x8xf32> to vector<16x8xbf16>
    %c24 = arith.constant 24 : index
    %c0_19 = arith.constant 0 : index
    %35 = vector.load %arg6[%c24, %c0_19] : memref<224x128xf32, #tpu.memory_space<vmem>>, vector<8x16xf32>
    %36 = arith.truncf %35 : vector<8x16xf32> to vector<8x16xbf16>
    %cst_20 = arith.constant dense<0.000000e+00> : vector<16x16xf32>
    %37 = tpu.matmul %34, %36, %cst_20 {dimension_numbers = #tpu.dot_dimension_numbers<[1], [0], [0], [1], [0, 0, 1, 1], [], []>} : vector<16x8xbf16>, vector<8x16xbf16>, vector<16x16xf32> -> vector<16x16xf32>
    %38 = arith.addf %32, %37 : vector<16x16xf32>
    %39 = arith.truncf %33 : vector<16x8xf32> to vector<16x8xbf16>
    %cst_21 = arith.constant dense<0.000000e+00> : vector<16x8xf32>
    %40 = tpu.matmul %28, %39, %cst_21 {dimension_numbers = #tpu.dot_dimension_numbers<[1], [0], [0], [1], [0, 0, 1, 1], [], []>} : vector<16x16xbf16>, vector<16x8xbf16>, vector<16x8xf32> -> vector<16x8xf32>
    %cst_22 = arith.constant 2.000000e+00 : f32
    %41 = vector.broadcast %cst_22 : f32 to vector<16x8xf32>
    %42 = arith.mulf %41, %40 : vector<16x8xf32>
    %43 = arith.subf %42, %25 : vector<16x8xf32>
    %44 = arith.truncf %43 : vector<16x8xf32> to vector<16x8xbf16>
    %c32 = arith.constant 32 : index
    %c0_23 = arith.constant 0 : index
    %45 = vector.load %arg6[%c32, %c0_23] : memref<224x128xf32, #tpu.memory_space<vmem>>, vector<8x16xf32>
    %46 = arith.truncf %45 : vector<8x16xf32> to vector<8x16xbf16>
    %cst_24 = arith.constant dense<0.000000e+00> : vector<16x16xf32>
    %47 = tpu.matmul %44, %46, %cst_24 {dimension_numbers = #tpu.dot_dimension_numbers<[1], [0], [0], [1], [0, 0, 1, 1], [], []>} : vector<16x8xbf16>, vector<8x16xbf16>, vector<16x16xf32> -> vector<16x16xf32>
    %48 = arith.addf %38, %47 : vector<16x16xf32>
    %c0_25 = arith.constant 0 : index
    %c256 = arith.constant 256 : index
    %49 = vector.load %arg7[%c0_25, %c256] : memref<1x1408xf32, #tpu.memory_space<vmem>>, vector<1x16xf32>
    %50 = vector.broadcast %49 : vector<1x16xf32> to vector<16x16xf32>
    %51 = arith.addf %48, %50 : vector<16x16xf32>
    %c40 = arith.constant 40 : index
    %c0_26 = arith.constant 0 : index
    %52 = vector.load %arg6[%c40, %c0_26] : memref<224x128xf32, #tpu.memory_space<vmem>>, vector<16x32xf32>
    %53 = arith.truncf %51 : vector<16x16xf32> to vector<16x16xbf16>
    %54 = arith.truncf %52 : vector<16x32xf32> to vector<16x32xbf16>
    %cst_27 = arith.constant dense<0.000000e+00> : vector<16x32xf32>
    %55 = tpu.matmul %53, %54, %cst_27 {dimension_numbers = #tpu.dot_dimension_numbers<[1], [0], [0], [1], [0, 0, 1, 1], [], []>} : vector<16x16xbf16>, vector<16x32xbf16>, vector<16x32xf32> -> vector<16x32xf32>
    %c0_28 = arith.constant 0 : index
    %c384 = arith.constant 384 : index
    %56 = vector.load %arg7[%c0_28, %c384] : memref<1x1408xf32, #tpu.memory_space<vmem>>, vector<1x32xf32>
    %57 = vector.broadcast %56 : vector<1x32xf32> to vector<16x32xf32>
    %58 = arith.addf %55, %57 : vector<16x32xf32>
    %cst_29 = arith.constant 0.000000e+00 : f32
    %59 = vector.broadcast %cst_29 : f32 to vector<16x32xf32>
    %60 = arith.cmpf oge, %58, %59 : vector<16x32xf32>
    %cst_30 = arith.constant 0.00999999977 : f32
    %61 = vector.broadcast %cst_30 : f32 to vector<16x32xf32>
    %62 = arith.mulf %61, %58 : vector<16x32xf32>
    %63 = arith.select %60, %58, %62 : vector<16x32xi1>, vector<16x32xf32>
    %c56 = arith.constant 56 : index
    %c0_31 = arith.constant 0 : index
    %64 = vector.load %arg6[%c56, %c0_31] : memref<224x128xf32, #tpu.memory_space<vmem>>, vector<32x32xf32>
    %65 = arith.truncf %63 : vector<16x32xf32> to vector<16x32xbf16>
    %66 = arith.truncf %64 : vector<32x32xf32> to vector<32x32xbf16>
    %cst_32 = arith.constant dense<0.000000e+00> : vector<16x32xf32>
    %67 = tpu.matmul %65, %66, %cst_32 {dimension_numbers = #tpu.dot_dimension_numbers<[1], [0], [0], [1], [0, 0, 1, 1], [], []>} : vector<16x32xbf16>, vector<32x32xbf16>, vector<16x32xf32> -> vector<16x32xf32>
    %c0_33 = arith.constant 0 : index
    %c512 = arith.constant 512 : index
    %68 = vector.load %arg7[%c0_33, %c512] : memref<1x1408xf32, #tpu.memory_space<vmem>>, vector<1x32xf32>
    %69 = vector.broadcast %68 : vector<1x32xf32> to vector<16x32xf32>
    %70 = arith.addf %67, %69 : vector<16x32xf32>
    %cst_34 = arith.constant 0.000000e+00 : f32
    %71 = vector.broadcast %cst_34 : f32 to vector<16x32xf32>
    %72 = arith.cmpf oge, %70, %71 : vector<16x32xf32>
    %cst_35 = arith.constant 0.00999999977 : f32
    %73 = vector.broadcast %cst_35 : f32 to vector<16x32xf32>
    %74 = arith.mulf %73, %70 : vector<16x32xf32>
    %75 = arith.select %72, %70, %74 : vector<16x32xi1>, vector<16x32xf32>
    %c0_36 = arith.constant 0 : index
    %c0_37 = arith.constant 0 : index
    %c0_38 = arith.constant 0 : index
    %76 = vector.load %arg5[%c0_36, %c0_37, %c0_38] : memref<1x2x8xf32, #tpu.memory_space<vmem>>, vector<1x2x8xf32>
    %77 = vector.shape_cast %76 : vector<1x2x8xf32> to vector<2x8xf32>
    %c88 = arith.constant 88 : index
    %c0_39 = arith.constant 0 : index
    %78 = vector.load %arg6[%c88, %c0_39] : memref<224x128xf32, #tpu.memory_space<vmem>>, vector<8x64xf32>
    %79 = arith.truncf %77 : vector<2x8xf32> to vector<2x8xbf16>
    %80 = arith.truncf %78 : vector<8x64xf32> to vector<8x64xbf16>
    %cst_40 = arith.constant dense<0.000000e+00> : vector<2x64xf32>
    %81 = tpu.matmul %79, %80, %cst_40 {dimension_numbers = #tpu.dot_dimension_numbers<[1], [0], [0], [1], [0, 0, 1, 1], [], []>} : vector<2x8xbf16>, vector<8x64xbf16>, vector<2x64xf32> -> vector<2x64xf32>
    %c0_41 = arith.constant 0 : index
    %c640 = arith.constant 640 : index
    %82 = vector.load %arg7[%c0_41, %c640] : memref<1x1408xf32, #tpu.memory_space<vmem>>, vector<1x64xf32>
    %83 = vector.broadcast %82 : vector<1x64xf32> to vector<2x64xf32>
    %84 = arith.addf %81, %83 : vector<2x64xf32>
    %85 = vector.extract_strided_slice %84 {offsets = [0, 0], sizes = [2, 32], strides = [1, 1]} : vector<2x64xf32> to vector<2x32xf32>
    %cst_42 = arith.constant 0.000000e+00 : f32
    %86 = vector.broadcast %cst_42 : f32 to vector<2x32xf32>
    %87 = arith.cmpf oge, %85, %86 : vector<2x32xf32>
    %cst_43 = arith.constant 0.00999999977 : f32
    %88 = vector.broadcast %cst_43 : f32 to vector<2x32xf32>
    %89 = arith.mulf %88, %85 : vector<2x32xf32>
    %90 = arith.select %87, %85, %89 : vector<2x32xi1>, vector<2x32xf32>
    %c96 = arith.constant 96 : index
    %c0_44 = arith.constant 0 : index
    %91 = vector.load %arg6[%c96, %c0_44] : memref<224x128xf32, #tpu.memory_space<vmem>>, vector<32x32xf32>
    %92 = arith.truncf %90 : vector<2x32xf32> to vector<2x32xbf16>
    %93 = arith.truncf %91 : vector<32x32xf32> to vector<32x32xbf16>
    %cst_45 = arith.constant dense<0.000000e+00> : vector<2x32xf32>
    %94 = tpu.matmul %92, %93, %cst_45 {dimension_numbers = #tpu.dot_dimension_numbers<[1], [0], [0], [1], [0, 0, 1, 1], [], []>} : vector<2x32xbf16>, vector<32x32xbf16>, vector<2x32xf32> -> vector<2x32xf32>
    %c0_46 = arith.constant 0 : index
    %c768 = arith.constant 768 : index
    %95 = vector.load %arg7[%c0_46, %c768] : memref<1x1408xf32, #tpu.memory_space<vmem>>, vector<1x32xf32>
    %96 = vector.broadcast %95 : vector<1x32xf32> to vector<2x32xf32>
    %97 = arith.addf %94, %96 : vector<2x32xf32>
    %cst_47 = arith.constant 0.000000e+00 : f32
    %98 = vector.broadcast %cst_47 : f32 to vector<2x32xf32>
    %99 = arith.cmpf oge, %97, %98 : vector<2x32xf32>
    %cst_48 = arith.constant 0.00999999977 : f32
    %100 = vector.broadcast %cst_48 : f32 to vector<2x32xf32>
    %101 = arith.mulf %100, %97 : vector<2x32xf32>
    %102 = arith.select %99, %97, %101 : vector<2x32xi1>, vector<2x32xf32>
    %103 = vector.extract_strided_slice %84 {offsets = [0, 32], sizes = [2, 32], strides = [1, 1]} : vector<2x64xf32> to vector<2x32xf32>
    %c128_49 = arith.constant 128 : index
    %c0_50 = arith.constant 0 : index
    %104 = vector.load %arg6[%c128_49, %c0_50] : memref<224x128xf32, #tpu.memory_space<vmem>>, vector<32x32xf32>
    %105 = arith.truncf %103 : vector<2x32xf32> to vector<2x32xbf16>
    %106 = arith.truncf %104 : vector<32x32xf32> to vector<32x32xbf16>
    %cst_51 = arith.constant dense<0.000000e+00> : vector<2x32xf32>
    %107 = tpu.matmul %105, %106, %cst_51 {dimension_numbers = #tpu.dot_dimension_numbers<[1], [0], [0], [1], [0, 0, 1, 1], [], []>} : vector<2x32xbf16>, vector<32x32xbf16>, vector<2x32xf32> -> vector<2x32xf32>
    %c0_52 = arith.constant 0 : index
    %c896 = arith.constant 896 : index
    %108 = vector.load %arg7[%c0_52, %c896] : memref<1x1408xf32, #tpu.memory_space<vmem>>, vector<1x32xf32>
    %109 = vector.broadcast %108 : vector<1x32xf32> to vector<2x32xf32>
    %110 = arith.addf %107, %109 : vector<2x32xf32>
    %cst_53 = arith.constant 0.000000e+00 : f32
    %111 = vector.broadcast %cst_53 : f32 to vector<2x32xf32>
    %112 = arith.cmpf oge, %110, %111 : vector<2x32xf32>
    %cst_54 = arith.constant 0.00999999977 : f32
    %113 = vector.broadcast %cst_54 : f32 to vector<2x32xf32>
    %114 = arith.mulf %113, %110 : vector<2x32xf32>
    %115 = arith.select %112, %110, %114 : vector<2x32xi1>, vector<2x32xf32>
    %c0_55 = arith.constant 0 : index
    %c0_56 = arith.constant 0 : index
    %c0_57 = arith.constant 0 : index
    %116 = vector.load %arg3[%c0_55, %c0_56, %c0_57] : memref<1x16x2xf32, #tpu.memory_space<vmem>>, vector<1x16x2xf32>
    %117 = vector.shape_cast %116 : vector<1x16x2xf32> to vector<16x2xf32>
    %118 = vector.extract_strided_slice %117 {offsets = [0, 0], sizes = [16, 1], strides = [1, 1]} : vector<16x2xf32> to vector<16x1xf32>
    %119 = vector.extract_strided_slice %102 {offsets = [0, 0], sizes = [1, 32], strides = [1, 1]} : vector<2x32xf32> to vector<1x32xf32>
    %120 = vector.broadcast %118 : vector<16x1xf32> to vector<16x32xf32>
    %121 = vector.broadcast %119 : vector<1x32xf32> to vector<16x32xf32>
    %122 = arith.mulf %120, %121 : vector<16x32xf32>
    %123 = vector.extract_strided_slice %117 {offsets = [0, 1], sizes = [16, 1], strides = [1, 1]} : vector<16x2xf32> to vector<16x1xf32>
    %124 = vector.extract_strided_slice %102 {offsets = [1, 0], sizes = [1, 32], strides = [1, 1]} : vector<2x32xf32> to vector<1x32xf32>
    %125 = vector.broadcast %123 : vector<16x1xf32> to vector<16x32xf32>
    %126 = vector.broadcast %124 : vector<1x32xf32> to vector<16x32xf32>
    %127 = arith.mulf %125, %126 : vector<16x32xf32>
    %128 = arith.addf %122, %127 : vector<16x32xf32>
    %129 = arith.mulf %75, %128 : vector<16x32xf32>
    %cst_58 = arith.constant dense<0.000000e+00> : vector<16xf32>
    %130 = vector.multi_reduction <add>, %129, %cst_58 [1] : vector<16x32xf32> to vector<16xf32>
    %131 = vector.shape_cast %130 : vector<16xf32> to vector<16x1xf32>
    %c0_59 = arith.constant 0 : index
    %c0_60 = arith.constant 0 : index
    %c0_61 = arith.constant 0 : index
    %132 = vector.load %arg4[%c0_59, %c0_60, %c0_61] : memref<1x2x16xf32, #tpu.memory_space<vmem>>, vector<1x2x16xf32>
    %133 = vector.shape_cast %132 : vector<1x2x16xf32> to vector<2x16xf32>
    %134 = vector.broadcast %131 : vector<16x1xf32> to vector<16x32xf32>
    %135 = arith.mulf %134, %75 : vector<16x32xf32>
    %136 = arith.truncf %133 : vector<2x16xf32> to vector<2x16xbf16>
    %137 = arith.truncf %135 : vector<16x32xf32> to vector<16x32xbf16>
    %cst_62 = arith.constant dense<0.000000e+00> : vector<2x32xf32>
    %138 = tpu.matmul %136, %137, %cst_62 {dimension_numbers = #tpu.dot_dimension_numbers<[1], [0], [0], [1], [0, 0, 1, 1], [], []>} : vector<2x16xbf16>, vector<16x32xbf16>, vector<2x32xf32> -> vector<2x32xf32>
    %139 = tpu.concatenate %138, %115 in 1 : vector<2x32xf32>, vector<2x32xf32> -> vector<2x64xf32>
    %cst_63 = arith.constant dense<0.000000e+00> : vector<64xf32>
    %140 = vector.multi_reduction <add>, %139, %cst_63 [0] : vector<2x64xf32> to vector<64xf32>
    %141 = vector.shape_cast %140 : vector<64xf32> to vector<1x64xf32>
    %cst_64 = arith.constant 2.000000e+00 : f32
    %142 = vector.broadcast %cst_64 : f32 to vector<1x64xf32>
    %143 = arith.divf %141, %142 : vector<1x64xf32>
    %144 = vector.broadcast %143 : vector<1x64xf32> to vector<2x64xf32>
    %145 = arith.subf %139, %144 : vector<2x64xf32>
    %146 = arith.mulf %145, %145 : vector<2x64xf32>
    %cst_65 = arith.constant dense<0.000000e+00> : vector<64xf32>
    %147 = vector.multi_reduction <add>, %146, %cst_65 [0] : vector<2x64xf32> to vector<64xf32>
    %148 = vector.shape_cast %147 : vector<64xf32> to vector<1x64xf32>
    %cst_66 = arith.constant 2.000000e+00 : f32
    %149 = vector.broadcast %cst_66 : f32 to vector<1x64xf32>
    %150 = arith.divf %148, %149 : vector<1x64xf32>
    %151 = vector.broadcast %143 : vector<1x64xf32> to vector<2x64xf32>
    %152 = arith.subf %139, %151 : vector<2x64xf32>
    %cst_67 = arith.constant 9.99999974E-6 : f32
    %153 = vector.broadcast %cst_67 : f32 to vector<1x64xf32>
    %154 = arith.addf %150, %153 : vector<1x64xf32>
    %155 = math.rsqrt %154 : vector<1x64xf32>
    %156 = vector.broadcast %155 : vector<1x64xf32> to vector<2x64xf32>
    %157 = arith.mulf %152, %156 : vector<2x64xf32>
    %c0_68 = arith.constant 0 : index
    %c1024 = arith.constant 1024 : index
    %158 = vector.load %arg7[%c0_68, %c1024] : memref<1x1408xf32, #tpu.memory_space<vmem>>, vector<1x64xf32>
    %159 = vector.broadcast %158 : vector<1x64xf32> to vector<2x64xf32>
    %160 = arith.mulf %157, %159 : vector<2x64xf32>
    %c0_69 = arith.constant 0 : index
    %c1152 = arith.constant 1152 : index
    %161 = vector.load %arg7[%c0_69, %c1152] : memref<1x1408xf32, #tpu.memory_space<vmem>>, vector<1x64xf32>
    %162 = vector.broadcast %161 : vector<1x64xf32> to vector<2x64xf32>
    %163 = arith.addf %160, %162 : vector<2x64xf32>
    %c160 = arith.constant 160 : index
    %c0_70 = arith.constant 0 : index
    %164 = vector.load %arg6[%c160, %c0_70] : memref<224x128xf32, #tpu.memory_space<vmem>>, vector<64x4xf32>
    %165 = arith.truncf %163 : vector<2x64xf32> to vector<2x64xbf16>
    %166 = arith.truncf %164 : vector<64x4xf32> to vector<64x4xbf16>
    %cst_71 = arith.constant dense<0.000000e+00> : vector<2x4xf32>
    %167 = tpu.matmul %165, %166, %cst_71 {dimension_numbers = #tpu.dot_dimension_numbers<[1], [0], [0], [1], [0, 0, 1, 1], [], []>} : vector<2x64xbf16>, vector<64x4xbf16>, vector<2x4xf32> -> vector<2x4xf32>
    %c0_72 = arith.constant 0 : index
    %c1280 = arith.constant 1280 : index
    %168 = vector.load %arg7[%c0_72, %c1280] : memref<1x1408xf32, #tpu.memory_space<vmem>>, vector<1x4xf32>
    %169 = vector.broadcast %168 : vector<1x4xf32> to vector<2x4xf32>
    %170 = arith.addf %167, %169 : vector<2x4xf32>
    %c0_73 = arith.constant 0 : index
    %c0_74 = arith.constant 0 : index
    %c0_75 = arith.constant 0 : index
    %171 = vector.load %arg8[%c0_73, %c0_74, %c0_75] : memref<1x2x4xf32, #tpu.memory_space<vmem>>, vector<1x2x4xf32>
    %172 = vector.shape_cast %171 : vector<1x2x4xf32> to vector<2x4xf32>
    %173 = vector.shape_cast %170 : vector<2x4xf32> to vector<1x2x4xf32>
    tpu.vector_store %arg8[%c0_73, %c0_74, %c0_75], %173 {strides = array<i32>} : memref<1x2x4xf32, #tpu.memory_space<vmem>>, vector<1x2x4xf32>,
    return
  }
  func.func @transform_0(%arg0: i32) -> (i32, i32, i32) {
    %c0_i32 = arith.constant 0 : i32
    %c0_i32_0 = arith.constant 0 : i32
    %c0_i32_1 = arith.constant 0 : i32
    return %arg0, %c0_i32, %c0_i32_0 : i32, i32, i32
  }
  func.func @transform_1(%arg0: i32) -> (i32, i32, i32) {
    %c0_i32 = arith.constant 0 : i32
    %c0_i32_0 = arith.constant 0 : i32
    %c0_i32_1 = arith.constant 0 : i32
    return %arg0, %c0_i32, %c0_i32_0 : i32, i32, i32
  }
  func.func @transform_2(%arg0: i32) -> (i32, i32, i32) {
    %c0_i32 = arith.constant 0 : i32
    %c0_i32_0 = arith.constant 0 : i32
    %c0_i32_1 = arith.constant 0 : i32
    return %arg0, %c0_i32, %c0_i32_0 : i32, i32, i32
  }
  func.func @transform_3(%arg0: i32) -> (i32, i32, i32) {
    %c0_i32 = arith.constant 0 : i32
    %c0_i32_0 = arith.constant 0 : i32
    %c0_i32_1 = arith.constant 0 : i32
    return %arg0, %c0_i32, %c0_i32_0 : i32, i32, i32
  }
  func.func @transform_4(%arg0: i32) -> (i32, i32, i32) {
    %c0_i32 = arith.constant 0 : i32
    %c0_i32_0 = arith.constant 0 : i32
    %c0_i32_1 = arith.constant 0 : i32
    return %arg0, %c0_i32, %c0_i32_0 : i32, i32, i32
  }
  func.func @transform_5(%arg0: i32) -> (i32, i32) {
    %c0_i32 = arith.constant 0 : i32
    %c0_i32_0 = arith.constant 0 : i32
    %c0_i32_1 = arith.constant 0 : i32
    return %c0_i32, %c0_i32_0 : i32, i32
  }
  func.func @transform_6(%arg0: i32) -> (i32, i32) {
    %c0_i32 = arith.constant 0 : i32
    %c0_i32_0 = arith.constant 0 : i32
    %c0_i32_1 = arith.constant 0 : i32
    return %c0_i32, %c0_i32_0 : i32, i32
  }
  func.func @transform_7(%arg0: i32) -> (i32, i32, i32) {
    %c0_i32 = arith.constant 0 : i32
    %c0_i32_0 = arith.constant 0 : i32
    %c0_i32_1 = arith.constant 0 : i32
    return %arg0, %c0_i32, %c0_i32_0 : i32, i32, i32
  }
}

</mosaic_0001>

<llo_original>
// kernel: tpu_custom_call.1
$region0: #{tpu_custom_call.1}
  #allocation0 [shape = 'u32[]', space=smem, size = 0x4, offset = 0x4, fixed_abs, tag = 'smem constant byte address 0x4 - core index']
  #allocation1 [shape = 'u32[72,128]{1,0:T(1,128)}', space=vmem, size = 0x9000, scoped, tag = 'internal scratch']
  %s0 = inlined_call_operand.vmem [shape: f32[1,16,8], index: 0, kind: input, shape index: {}]
  %s1 = inlined_call_operand.vmem [shape: f32[1,16,16], index: 1, kind: input, shape index: {}]
  %s2 = inlined_call_operand.vmem [shape: f32[1,16,2], index: 2, kind: input, shape index: {}]
  %s3 = inlined_call_operand.vmem [shape: f32[1,2,16], index: 3, kind: input, shape index: {}]
  %s4 = inlined_call_operand.vmem [shape: f32[1,2,8], index: 4, kind: input, shape index: {}]
  %s5 = inlined_call_operand.hbm [shape: f32[224,128], index: 5, kind: input, shape index: {}]
  %s6 = inlined_call_operand.vmem [shape: f32[1,1408], index: 6, kind: input, shape index: {}]
  %s7 = inlined_call_operand.hbm [shape: f32[1,2,4], index: 7, kind: output, shape index: {}]
  %s8 = sld [smem:[#allocation0]]
  $region42: #{tpu_custom_call.1} parent=0
    _
  %s10 = ssub.s32 1, %s8
  %s11 = scalar_select 0, %s10, %s8
  $region1: #{tpu_custom_call.1} parent=0
    #allocation2 [shape = 'u8[114688]{0}', space=vmem, size = 0x1c000, scoped, tag = 'input window, operand 5, single buffered']
    #allocation3 [shape = 's32[1]{0}', space=sflag, size = 0x4, scoped, tag = 'scoped memory for tpu_custom_call.1']
    #allocation4 [shape = 's32[1]{0}', space=sflag, size = 0x4, scoped, tag = 'scoped memory for tpu_custom_call.1']
    #allocation5 [shape = 'u8[1024]{0}', space=vmem, size = 0x400, scoped, tag = 'output window, operand 0, single buffered']
    %12 = vsyncpa [#allocation3], 0
    %13 = vsyncpa [#allocation4], 0
    // Predicated region
    $region2: #{tpu_custom_call.1} parent=1 // pred_check
      _
    $region3: #{tpu_custom_call.1} parent=1 // pred_check_branch
      %15 = sbr.rel (0) target = $region5
    $region4: #{tpu_custom_call.1} parent=1 // pred_region
      _
    $region5: #{tpu_custom_call.1} parent=1 // pred_fallthru
      _
    // Predicated region
    $region6: #{tpu_custom_call.1} parent=1 // pred_check
      _
    $region7: #{tpu_custom_call.1} parent=1 // pred_check_branch
      %17 = sbr.rel (0) target = $region9
    $region8: #{tpu_custom_call.1} parent=1 // pred_region
      _
    $region9: #{tpu_custom_call.1} parent=1 // pred_fallthru
      _
    // Predicated region
    $region10: #{tpu_custom_call.1} parent=1 // pred_check
      _
    $region11: #{tpu_custom_call.1} parent=1 // pred_check_branch
      %19 = sbr.rel (0) target = $region13
    $region12: #{tpu_custom_call.1} parent=1 // pred_region
      _
    $region13: #{tpu_custom_call.1} parent=1 // pred_fallthru
      _
    // Predicated region
    $region14: #{tpu_custom_call.1} parent=1 // pred_check
      _
    $region15: #{tpu_custom_call.1} parent=1 // pred_check_branch
      %21 = sbr.rel (0) target = $region17
    $region16: #{tpu_custom_call.1} parent=1 // pred_region
      _
    $region17: #{tpu_custom_call.1} parent=1 // pred_fallthru
      _
    // Predicated region
    $region18: #{tpu_custom_call.1} parent=1 // pred_check
      _
    $region19: #{tpu_custom_call.1} parent=1 // pred_check_branch
      %23 = sbr.rel (0) target = $region21
    $region20: #{tpu_custom_call.1} parent=1 // pred_region
      _
    $region21: #{tpu_custom_call.1} parent=1 // pred_fallthru
      _
    // Predicated region
    $region22: #{tpu_custom_call.1} parent=1 // pred_check
      _
    $region23: #{tpu_custom_call.1} parent=1 // pred_check_branch
      %25 = sbr.rel (0) target = $region25
    $region24: #{tpu_custom_call.1} parent=1 // pred_region
      %27 = vsyncadd [#allocation3], 0
      %s28 = sshll.u32 %s5, 4
      %s29 = int_to_ptr.hbm [resolvable:$true] %s28
      %s30 = sshll.u32 [#allocation2], 4
      %s31 = int_to_ptr.vmem [resolvable:$true] %s30
      %36 = dma.hbm_to_vmem [thread:$0]  %s29, 3584, %s31, [#allocation3], 128, 128, 8
    $region25: #{tpu_custom_call.1} parent=1 // pred_fallthru
      _
    // Predicated region
    $region26: #{tpu_custom_call.1} parent=1 // pred_check
      _
    $region27: #{tpu_custom_call.1} parent=1 // pred_check_branch
      %38 = sbr.rel (0) target = $region29
    $region28: #{tpu_custom_call.1} parent=1 // pred_region
      _
    $region29: #{tpu_custom_call.1} parent=1 // pred_fallthru
      _
    // Predicated region
    $region30: #{tpu_custom_call.1} parent=1 // pred_check
      _
    $region31: #{tpu_custom_call.1} parent=1 // pred_check_branch
      %40 = sbr.rel (0) target = $region33
    $region32: #{tpu_custom_call.1} parent=1 // pred_region
      %42 = dma.done [#allocation3], 3584
    $region33: #{tpu_custom_call.1} parent=1 // pred_fallthru
      _
    %v44 = vld [vmem:[%s0] sm:$0xff]
    %v45 = vld [vmem:[%s0 + $0x8] sm:$0xff]
    %v46 = vld [vmem:[#allocation2] sm:$0xff]
    %v47 = vpack.c.bf16 %v45, %v44
    %v48 = vpack.c.bf16 %v46, %v46
    %v49 = vld [vmem:[%s6] sm:$0x1]
    %v51 = vperm.slane %v49, 0
    %vm53 = vcmask 64512
    %v55 = vsel %vm53, %v47, 0
    %vm57 = vcmask 1043456
    %v59 = vsel %vm57, %v48, 0
    %61 = vmatpush.bf16.msra.mxu0 0
    %62 = vmatpush.bf16.msra.mxu0 0
    %63 = vmatpush.bf16.msra.mxu0 0
    %64 = vmatpush.bf16.msra.mxu0 0
    %65 = vmatpush.bf16.msra.mxu0 0
    %66 = vmatpush.bf16.msra.mxu0 0
    %67 = vmatpush.bf16.msra.mxu0 0
    %68 = vmatpush.bf16.msra.mxu0 %v59
    %69 = vmatmul.bf16.gmra.mxu0 %v55
    %v70 = vpop.f32.mrf.mxu0
    %v71 = vadd.f32 %v51, %v70
    %v72 = vpop.f32.mrf.mxu0
    %v73 = vadd.f32 %v51, %v72
    %74 = vdwg.mxu0
    %vm75 = vcmp.ge.f32.partialorder %v71, 0.0
    %vm76 = vcmp.ge.f32.partialorder %v73, 0.0
    %v77 = vmul.f32 %v71, 0.01
    %v78 = vmul.f32 %v73, 0.01
    %v79 = vsel %vm75, %v71, %v77
    %v80 = vsel %vm76, %v73, %v78
    %v81 = vld [vmem:[#allocation2 + $0x8] sm:$0xff]
    %v82 = vpack.c.bf16 %v80, %v79
    %v83 = vpack.c.bf16 %v81, %v81
    %v84 = vld [vmem:[%s6 + $0x1] sm:$0x1]
    %v86 = vperm.slane %v84, 0
    %v89 = vsel %vm53, %v82, 0
    %v92 = vsel %vm57, %v83, 0
    %94 = vmatpush.bf16.msra.mxu0 0
    %95 = vmatpush.bf16.msra.mxu0 0
    %96 = vmatpush.bf16.msra.mxu0 0
    %97 = vmatpush.bf16.msra.mxu0 0
    %98 = vmatpush.bf16.msra.mxu0 0
    %99 = vmatpush.bf16.msra.mxu0 0
    %100 = vmatpush.bf16.msra.mxu0 0
    %101 = vmatpush.bf16.msra.mxu0 %v92
    %102 = vmatmul.bf16.gmra.mxu0 %v89
    %v103 = vpop.f32.mrf.mxu0
    %v104 = vadd.f32 %v86, %v103
    %v105 = vpop.f32.mrf.mxu0
    %v106 = vadd.f32 %v86, %v105
    %107 = vdwg.mxu0
    %vm108 = vcmp.ge.f32.partialorder %v104, 0.0
    %vm109 = vcmp.ge.f32.partialorder %v106, 0.0
    %v110 = vmul.f32 %v104, 0.01
    %v111 = vmul.f32 %v106, 0.01
    %v112 = vsel %vm108, %v104, %v110
    %v113 = vsel %vm109, %v106, %v111
    %v114 = vld [vmem:[%s1] sm:$0xff]
    %v115 = vld [vmem:[%s1 + $0x8] sm:$0xff]
    %v116 = vpack.c.bf16 %v115, %v114
    %v117 = vpack.c.bf16 %v113, %v112
    %v118 = vld [vmem:[#allocation2 + $0x10] sm:$0xff]
    %v119 = vpack.c.bf16 %v118, %v118
    %vm120 = vcmask 130048
    %v122 = vsel %vm120, %v116, 0
    %124 = vmatpush.bf16.msra.mxu0 0
    %125 = vmatpush.bf16.msra.mxu0 0
    %126 = vmatpush.bf16.msra.mxu0 0
    %127 = vmatpush.bf16.msra.mxu0 0
    %128 = vmatpush.bf16.msra.mxu0 0
    %129 = vmatpush.bf16.msra.mxu0 0
    %130 = vmatpush.bf16.msra.mxu0 0
    %131 = vmatpush.bf16.msra.mxu0 %v117
    %132 = vmatmul.bf16.gmra.mxu0 %v122
    %v133 = vpop.f32.mrf.mxu0
    %v134 = vadd.f32 0.0, %v133
    %v135 = vpop.f32.mrf.mxu0
    %v136 = vadd.f32 0.0, %v135
    %137 = vdwg.mxu0
    %v138 = vpack.c.bf16 %v136, %v134
    %v139 = vld [vmem:[#allocation2 + $0x18] sm:$0xff]
    %v140 = vpack.c.bf16 %v139, %v139
    %v142 = vsel %vm53, %v138, 0
    %v145 = vsel %vm57, %v140, 0
    %147 = vmatpush.bf16.msra.mxu0 0
    %148 = vmatpush.bf16.msra.mxu0 0
    %149 = vmatpush.bf16.msra.mxu0 0
    %150 = vmatpush.bf16.msra.mxu0 0
    %151 = vmatpush.bf16.msra.mxu0 0
    %152 = vmatpush.bf16.msra.mxu0 0
    %153 = vmatpush.bf16.msra.mxu0 0
    %154 = vmatpush.bf16.msra.mxu0 %v145
    %155 = vmatmul.bf16.gmra.mxu0 %v142
    %v156 = vpop.f32.mrf.mxu0
    %v157 = vadd.f32 0.0, %v156
    %v158 = vpop.f32.mrf.mxu0
    %v159 = vadd.f32 0.0, %v158
    %160 = vdwg.mxu0
    %v162 = vsel %vm53, %v117, 0
    %v165 = vsel %vm57, %v119, 0
    %167 = vmatpush.bf16.msra.mxu0 0
    %168 = vmatpush.bf16.msra.mxu0 0
    %169 = vmatpush.bf16.msra.mxu0 0
    %170 = vmatpush.bf16.msra.mxu0 0
    %171 = vmatpush.bf16.msra.mxu0 0
    %172 = vmatpush.bf16.msra.mxu0 0
    %173 = vmatpush.bf16.msra.mxu0 0
    %174 = vmatpush.bf16.msra.mxu0 %v165
    %175 = vmatmul.bf16.gmra.mxu0 %v162
    %v176 = vpop.f32.mrf.mxu0
    %v177 = vadd.f32 %v157, %v176
    %v178 = vpop.f32.mrf.mxu0
    %v179 = vadd.f32 %v159, %v178
    %180 = vdwg.mxu0
    %181 = vmatpush.bf16.msra.mxu0 0
    %182 = vmatpush.bf16.msra.mxu0 0
    %183 = vmatpush.bf16.msra.mxu0 0
    %184 = vmatpush.bf16.msra.mxu0 0
    %185 = vmatpush.bf16.msra.mxu0 0
    %186 = vmatpush.bf16.msra.mxu0 0
    %187 = vmatpush.bf16.msra.mxu0 0
    %188 = vmatpush.bf16.msra.mxu0 %v138
    %189 = vmatmul.bf16.gmra.mxu0 %v122
    %v190 = vpop.f32.mrf.mxu0
    %v191 = vadd.f32 0.0, %v190
    %v192 = vpop.f32.mrf.mxu0
    %v193 = vadd.f32 0.0, %v192
    %194 = vdwg.mxu0
    %v195 = vmul.f32 %v191, 2.0
    %v196 = vmul.f32 %v193, 2.0
    %v197 = vsub.f32 %v195, %v112
    %v198 = vsub.f32 %v196, %v113
    %v199 = vpack.c.bf16 %v198, %v197
    %v200 = vld [vmem:[#allocation2 + $0x20] sm:$0xff]
    %v201 = vpack.c.bf16 %v200, %v200
    %v203 = vsel %vm53, %v199, 0
    %v206 = vsel %vm57, %v201, 0
    %208 = vmatpush.bf16.msra.mxu0 0
    %209 = vmatpush.bf16.msra.mxu0 0
    %210 = vmatpush.bf16.msra.mxu0 0
    %211 = vmatpush.bf16.msra.mxu0 0
    %212 = vmatpush.bf16.msra.mxu0 0
    %213 = vmatpush.bf16.msra.mxu0 0
    %214 = vmatpush.bf16.msra.mxu0 0
    %215 = vmatpush.bf16.msra.mxu0 %v206
    %216 = vmatmul.bf16.gmra.mxu0 %v203
    %v217 = vpop.f32.mrf.mxu0
    %v218 = vadd.f32 0.0, %v217
    %v219 = vpop.f32.mrf.mxu0
    %v220 = vadd.f32 0.0, %v219
    %221 = vdwg.mxu0
    %v222 = vadd.f32 %v177, %v218
    %v223 = vadd.f32 %v179, %v220
    %v224 = vld [vmem:[%s6 + $0x2] sm:$0x1]
    %v226 = vperm.slane %v224, 0
    %v228 = vadd.f32 %v222, %v226
    %v229 = vadd.f32 %v223, %v226
    %v230 = vld [vmem:[#allocation2 + $0x28] sm:$0xff]
    %v231 = vld [vmem:[#allocation2 + $0x30] sm:$0xff]
    %v232 = vpack.c.bf16 %v229, %v228
    %v233 = vpack.c.bf16 %v231, %v230
    %v234 = vld [vmem:[%s6 + $0x3] sm:$0x1]
    %v236 = vperm.slane %v234, 0
    %v239 = vsel %vm120, %v232, 0
    %241 = vmatpush.bf16.msra.mxu0 0
    %242 = vmatpush.bf16.msra.mxu0 0
    %243 = vmatpush.bf16.msra.mxu0 0
    %244 = vmatpush.bf16.msra.mxu0 0
    %245 = vmatpush.bf16.msra.mxu0 0
    %246 = vmatpush.bf16.msra.mxu0 0
    %247 = vmatpush.bf16.msra.mxu0 0
    %248 = vmatpush.bf16.msra.mxu0 %v233
    %249 = vmatmul.bf16.gmra.mxu0 %v239
    %v250 = vpop.f32.mrf.mxu0
    %v251 = vadd.f32 %v236, %v250
    %v252 = vpop.f32.mrf.mxu0
    %v253 = vadd.f32 %v236, %v252
    %254 = vdwg.mxu0
    %vm255 = vcmp.ge.f32.partialorder %v251, 0.0
    %vm256 = vcmp.ge.f32.partialorder %v253, 0.0
    %v257 = vmul.f32 %v251, 0.01
    %v258 = vmul.f32 %v253, 0.01
    %v259 = vsel %vm255, %v251, %v257
    %v260 = vsel %vm256, %v253, %v258
    %v261 = vld [vmem:[#allocation2 + $0x38] sm:$0xff]
    %v262 = vld [vmem:[#allocation2 + $0x40] sm:$0xff]
    %v263 = vld [vmem:[#allocation2 + $0x48] sm:$0xff]
    %v264 = vld [vmem:[#allocation2 + $0x50] sm:$0xff]
    %v265 = vpack.c.bf16 %v260, %v259
    %v266 = vpack.c.bf16 %v262, %v261
    %v267 = vpack.c.bf16 %v264, %v263
    %v268 = vld [vmem:[%s6 + $0x4] sm:$0x1]
    %v270 = vperm.slane %v268, 0
    %vm272 = vcmask 261120
    %v274 = vsel %vm272, %v265, 0
    %276 = vmatpush.bf16.msra.mxu0 0
    %277 = vmatpush.bf16.msra.mxu0 0
    %278 = vmatpush.bf16.msra.mxu0 0
    %279 = vmatpush.bf16.msra.mxu0 0
    %280 = vmatpush.bf16.msra.mxu0 0
    %281 = vmatpush.bf16.msra.mxu0 0
    %282 = vmatpush.bf16.msra.mxu0 %v267
    %283 = vmatpush.bf16.msra.mxu0 %v266
    %284 = vmatmul.bf16.gmra.mxu0 %v274
    %v285 = vpop.f32.mrf.mxu0
    %v286 = vadd.f32 %v270, %v285
    %v287 = vpop.f32.mrf.mxu0
    %v288 = vadd.f32 %v270, %v287
    %289 = vdwg.mxu0
    %vm290 = vcmp.ge.f32.partialorder %v286, 0.0
    %vm291 = vcmp.ge.f32.partialorder %v288, 0.0
    %v292 = vmul.f32 %v286, 0.01
    %v293 = vmul.f32 %v288, 0.01
    %v294 = vsel %vm290, %v286, %v292
    %v295 = vsel %vm291, %v288, %v293
    %v296 = vld [vmem:[%s4] sm:$0x3]
    %v297 = vld [vmem:[#allocation2 + $0x58] sm:$0xff]
    %v298 = vpack.c.bf16 %v296, %v296
    %v299 = vpack.c.bf16 %v297, %v297
    %v300 = vld [vmem:[%s6 + $0x5] sm:$0x1]
    %v302 = vperm.slane %v300, 0
    %v305 = vsel %vm53, %v298, 0
    %v308 = vsel %vm57, %v299, 0
    %310 = vmatpush.bf16.msra.mxu0 0
    %311 = vmatpush.bf16.msra.mxu0 0
    %312 = vmatpush.bf16.msra.mxu0 0
    %313 = vmatpush.bf16.msra.mxu0 0
    %314 = vmatpush.bf16.msra.mxu0 0
    %315 = vmatpush.bf16.msra.mxu0 0
    %316 = vmatpush.bf16.msra.mxu0 0
    %317 = vmatpush.bf16.msra.mxu0 %v308
    %318 = vmatmul.bf16.gmra.mxu0 %v305
    %v319 = vpop.f32.mrf.mxu0
    %v320 = vadd.f32 %v302, %v319
    %v321 = vpop.f32.mrf.mxu0
    %322 = vdwg.mxu0
    %vm323 = vcmp.ge.f32.partialorder %v320, 0.0
    %v324 = vmul.f32 %v320, 0.01
    %v325 = vsel %vm323, %v320, %v324
    %v326 = vld [vmem:[#allocation2 + $0x60] sm:$0xff]
    %v327 = vld [vmem:[#allocation2 + $0x68] sm:$0xff]
    %v328 = vld [vmem:[#allocation2 + $0x70] sm:$0xff]
    %v329 = vld [vmem:[#allocation2 + $0x78] sm:$0xff]
    %v330 = vpack.c.bf16 %v325, %v325
    %v331 = vpack.c.bf16 %v327, %v326
    %v332 = vpack.c.bf16 %v329, %v328
    %v333 = vld [vmem:[%s6 + $0x6] sm:$0x1]
    %v335 = vperm.slane %v333, 0
    %v338 = vsel %vm272, %v330, 0
    %340 = vmatpush.bf16.msra.mxu0 0
    %341 = vmatpush.bf16.msra.mxu0 0
    %342 = vmatpush.bf16.msra.mxu0 0
    %343 = vmatpush.bf16.msra.mxu0 0
    %344 = vmatpush.bf16.msra.mxu0 0
    %345 = vmatpush.bf16.msra.mxu0 0
    %346 = vmatpush.bf16.msra.mxu0 %v332
    %347 = vmatpush.bf16.msra.mxu0 %v331
    %348 = vmatmul.bf16.gmra.mxu0 %v338
    %v349 = vpop.f32.mrf.mxu0
    %v350 = vadd.f32 %v335, %v349
    %v351 = vpop.f32.mrf.mxu0
    %352 = vdwg.mxu0
    %vm353 = vcmp.ge.f32.partialorder %v350, 0.0
    %v354 = vmul.f32 %v350, 0.01
    %v355 = vsel %vm353, %v350, %v354
    %v356 = vld [vmem:[#allocation2 + $0x80] sm:$0xff]
    %v357 = vld [vmem:[#allocation2 + $0x88] sm:$0xff]
    %v358 = vld [vmem:[#allocation2 + $0x90] sm:$0xff]
    %v359 = vld [vmem:[#allocation2 + $0x98] sm:$0xff]
    %v360 = vpack.c.bf16 %v320, %v320
    %v361 = vpack.c.bf16 %v357, %v356
    %v362 = vpack.c.bf16 %v359, %v358
    %v363 = vld [vmem:[%s6 + $0x7] sm:$0x1]
    %v365 = vperm.slane %v363, 0
    %368 = vrot.lane.b32.xlu0 %v360, 96
    %v369 = vpop.permute.xlu0 %368
    %v371 = vsel %vm272, %v369, 0
    %373 = vmatpush.bf16.msra.mxu0 0
    %374 = vmatpush.bf16.msra.mxu0 0
    %375 = vmatpush.bf16.msra.mxu0 0
    %376 = vmatpush.bf16.msra.mxu0 0
    %377 = vmatpush.bf16.msra.mxu0 0
    %378 = vmatpush.bf16.msra.mxu0 0
    %379 = vmatpush.bf16.msra.mxu0 %v362
    %380 = vmatpush.bf16.msra.mxu0 %v361
    %381 = vmatmul.bf16.gmra.mxu0 %v371
    %v382 = vpop.f32.mrf.mxu0
    %v383 = vadd.f32 %v365, %v382
    %v384 = vpop.f32.mrf.mxu0
    %385 = vdwg.mxu0
    %vm386 = vcmp.ge.f32.partialorder %v383, 0.0
    %v387 = vmul.f32 %v383, 0.01
    %v388 = vsel %vm386, %v383, %v387
    %v389 = vld [vmem:[%s2] sm:$0xff]
    %v390 = vld [vmem:[%s2 + $0x8] sm:$0xff]
    %392 = vset.pattern.permute.xlu0 0
    %393 = vperm.xlu0 %392, %v389
    %v394 = vpop.permute.xlu0 %393
    %397 = vset.pattern.permute.xlu0 0
    %398 = vperm.xlu0 %397, %v390
    %v399 = vpop.permute.xlu0 %398
    %v401 = vperm.slane %v355, 0
    %v402 = vmul.f32 %v394, %v401
    %v403 = vmul.f32 %v399, %v401
    %404 = vset.pattern.permute.xlu0 1
    %405 = vperm.xlu0 %404, %v389
    %v406 = vpop.permute.xlu0 %405
    %408 = vset.pattern.permute.xlu0 1
    %409 = vperm.xlu0 %408, %v390
    %v410 = vpop.permute.xlu0 %409
    %v412 = vperm.slane %v355, 1
    %v413 = vmul.f32 %v406, %v412
    %v414 = vmul.f32 %v410, %v412
    %v415 = vadd.f32 %v402, %v413
    %v416 = vadd.f32 %v403, %v414
    %v417 = vmul.f32 %v294, %v415
    %v418 = vmul.f32 %v295, %v416
    %v419 = vsel %vm272, %v417, 0.0
    %420 = vadd.xlane.f32.xlu0 %v419
    %v421 = vpop.xlane.xlu0 %420
    %v422 = vsel %vm272, %v418, 0.0
    %423 = vadd.xlane.f32.xlu0 %v422
    %v424 = vpop.xlane.xlu0 %423
    %v425 = vld [vmem:[%s3] sm:$0x3]
    %v426 = vmul.f32 %v421, %v294
    %v427 = vmul.f32 %v424, %v295
    %v428 = vpack.c.bf16 %v425, %v425
    %v429 = vpack.c.bf16 %v427, %v426
    %v431 = vsel %vm120, %v428, 0
    %433 = vmatpush.bf16.msra.mxu0 0
    %434 = vmatpush.bf16.msra.mxu0 0
    %435 = vmatpush.bf16.msra.mxu0 0
    %436 = vmatpush.bf16.msra.mxu0 0
    %437 = vmatpush.bf16.msra.mxu0 0
    %438 = vmatpush.bf16.msra.mxu0 0
    %439 = vmatpush.bf16.msra.mxu0 0
    %440 = vmatpush.bf16.msra.mxu0 %v429
    %441 = vmatmul.bf16.gmra.mxu0 %v431
    %v442 = vpop.f32.mrf.mxu0
    %v443 = vadd.f32 0.0, %v442
    %v444 = vpop.f32.mrf.mxu0
    %445 = vdwg.mxu0
    %447 = vrot.lane.b32.xlu0 %v388, 32
    %v448 = vpop.permute.xlu0 %447
    %v450 = vsel %vm272, %v443, %v448
    %vm451 = vcmask 517120
    %v452 = vsel %vm451, %v450, 0.0
    %v453 = vrot.slane %v452, 4
    %v454 = vadd.f32 %v452, %v453
    %v455 = vrot.slane %v454, 2
    %v456 = vadd.f32 %v454, %v455
    %v457 = vrot.slane %v456, 1
    %v458 = vadd.f32 %v456, %v457
    %v459 = vrcp.pop 2.0
    %v460 = vmul.f32 2.0, %v459
    %v461 = vsub.f32 1.0, %v460
    %v462 = vmul.f32 %v459, %v461
    %v463 = vadd.f32 %v459, %v462
    %vm464 = vweird.f32 %v459
    %v465 = vsel %vm464, %v459, %v463
    %v466 = vmul.f32 %v458, %v465
    %v467 = vsub.f32 %v450, %v466
    %v468 = vmul.f32 %v467, %v467
    %v469 = vsel %vm451, %v468, 0.0
    %v470 = vrot.slane %v469, 4
    %v471 = vadd.f32 %v469, %v470
    %v472 = vrot.slane %v471, 2
    %v473 = vadd.f32 %v471, %v472
    %v474 = vrot.slane %v473, 1
    %v475 = vadd.f32 %v473, %v474
    %v476 = vmul.f32 %v475, %v465
    %v477 = vadd.f32 %v476, 1e-05
    %v478 = vrsqrt.pop %v477
    %v479 = vmul.f32 %v478, %v477
    %v480 = vmul.f32 %v479, %v478
    %v481 = vmul.f32 0.5, %v480
    %v482 = vsub.f32 1.5, %v481
    %v483 = vmul.f32 %v478, %v482
    %vm484 = vweird.f32 %v477
    %vm485 = vweird.f32 %v478
    %vm486 = vmor %vm484, %vm485
    %v487 = vsel %vm486, %v478, %v483
    %v488 = vmul.f32 %v467, %v487
    %v489 = vld [vmem:[%s6 + $0x8] sm:$0x1]
    %v491 = vperm.slane %v489, 0
    %v493 = vmul.f32 %v488, %v491
    %v494 = vld [vmem:[%s6 + $0x9] sm:$0x1]
    %v496 = vperm.slane %v494, 0
    %v498 = vadd.f32 %v493, %v496
    %v499 = vld [vmem:[#allocation2 + $0xa0] sm:$0xff]
    %v500 = vld [vmem:[#allocation2 + $0xa8] sm:$0xff]
    %v501 = vld [vmem:[#allocation2 + $0xb0] sm:$0xff]
    %v502 = vld [vmem:[#allocation2 + $0xb8] sm:$0xff]
    %v503 = vld [vmem:[#allocation2 + $0xc0] sm:$0xff]
    %v504 = vld [vmem:[#allocation2 + $0xc8] sm:$0xff]
    %v505 = vld [vmem:[#allocation2 + $0xd0] sm:$0xff]
    %v506 = vld [vmem:[#allocation2 + $0xd8] sm:$0xff]
    %v507 = vpack.c.bf16 %v498, %v498
    %v508 = vpack.c.bf16 %v500, %v499
    %v509 = vpack.c.bf16 %v502, %v501
    %v510 = vpack.c.bf16 %v504, %v503
    %v511 = vpack.c.bf16 %v506, %v505
    %v512 = vld [vmem:[%s6 + $0xa] sm:$0x1]
    %v514 = vperm.slane %v512, 0
    %vm516 = vcmask 523264
    %v518 = vsel %vm516, %v507, 0
    %520 = vmatpush.bf16.msra.mxu0 0
    %521 = vmatpush.bf16.msra.mxu0 0
    %522 = vmatpush.bf16.msra.mxu0 0
    %523 = vmatpush.bf16.msra.mxu0 0
    %524 = vmatpush.bf16.msra.mxu0 %v511
    %525 = vmatpush.bf16.msra.mxu0 %v510
    %526 = vmatpush.bf16.msra.mxu0 %v509
    %527 = vmatpush.bf16.msra.mxu0 %v508
    %528 = vmatmul.bf16.gmra.mxu0 %v518
    %v529 = vpop.f32.mrf.mxu0
    %v530 = vadd.f32 %v514, %v529
    %v531 = vpop.f32.mrf.mxu0
    %532 = vdwg.mxu0
    %vm533 = vcmask 25600
    %534 = vst.msk [vmem:[#allocation5] sm:$0x3] %vm533, %v530
    // Predicated region
    $region34: #{tpu_custom_call.1} parent=1 // pred_check
      _
    $region35: #{tpu_custom_call.1} parent=1 // pred_check_branch
      %536 = sbr.rel (0) target = $region37
    $region36: #{tpu_custom_call.1} parent=1 // pred_region
      %538 = vsyncadd [#allocation4], 0
      %s540 = sshll.u32 [#allocation5], 4
      %s541 = int_to_ptr.vmem [resolvable:$true] %s540
      %s542 = sshll.u32 %s7, 4
      %s543 = int_to_ptr.hbm [resolvable:$true] %s542
      %545 = dma.vmem_to_hbm [thread:$0]  %s541, 32, %s543, [#allocation4]
    $region37: #{tpu_custom_call.1} parent=1 // pred_fallthru
      _
    // Predicated region
    $region38: #{tpu_custom_call.1} parent=1 // pred_check
      _
    $region39: #{tpu_custom_call.1} parent=1 // pred_check_branch
      %547 = sbr.rel (0) target = $region41
    $region40: #{tpu_custom_call.1} parent=1 // pred_region
      %549 = dma.done [#allocation4], 32
    $region41: #{tpu_custom_call.1} parent=1 // pred_fallthru
      _
    %550 = vsyncpa [#allocation3], 1
    %551 = vsyncpa [#allocation4], 1

</llo_original>
